<compile_context>
chip_gen: v7x
topology: tpu7x:2x2x1
jax: 0.10.0
libtpu: 0.0.40
codegen_flags: <defaults>
</compile_context>

<pallas_src>
import jax
import jax.numpy as jnp
from jax import lax
from jax.experimental import pallas as pl
from jax.experimental.pallas import tpu as pltpu


def _gcn_fused_kernel(adj_ref, x_ref, w1_ref, b1_ref, w2_ref, b2_ref,
                      adj_rec_ref, h_ref):
    # TODO(synk): decoder feat_drop dropout is identity in eval mode (not modelled).
    adj = adj_ref[...]                                                 # (N, N) f32, adj[dst, src]

    # --- DGL 'both' degree normalization, computed once, in f32 (exact for 0/1 adj).
    # jnp.maximum(deg, 1) == DGL's degs.clamp(min=1); identical here since self-loops exist.
    in_deg = jnp.maximum(jnp.sum(adj, axis=1, keepdims=True), 1.0)     # (N, 1) dst in-degree
    out_deg = jnp.maximum(jnp.sum(adj, axis=0, keepdims=True), 1.0)    # (1, N) src out-degree
    dst_norm = lax.rsqrt(in_deg)                                       # (N, 1), EUP
    src_norm = lax.rsqrt(out_deg)                                      # (1, N), EUP

    # A * D_out^{-1/2}: the src-side scale is folded into the bf16 cast the MXU needs
    # anyway; computed once and reused by both GraphConv layers.
    adj_src = (adj * src_norm).astype(jnp.bfloat16)                    # (N, N) bf16

    # ---- layer 1: relu( D_in^{-1/2} (A_src @ X) @ W1 + b1 )  [(Â X) W1 order: din < h1]
    x_bf = x_ref[...].astype(jnp.bfloat16)                             # (N, din)
    agg1 = jnp.dot(adj_src, x_bf, preferred_element_type=jnp.float32)  # (N, din), f32 acc
    agg1 = agg1 * dst_norm                                             # dst scale on feature path
    h1 = jnp.dot(agg1.astype(jnp.bfloat16), w1_ref[...].astype(jnp.bfloat16),
                 preferred_element_type=jnp.float32) + b1_ref[...]     # (N, h1)
    h1 = jnp.maximum(h1, 0.0)

    # ---- layer 2: relu( D_in^{-1/2} (A_src @ (h1 W2)) + b2 )  [Â (h W2) order: out < h1]
    # (torch also sets self.mean / self.log_std = conv2(g, h); identical to h2, not returned)
    hw = jnp.dot(h1.astype(jnp.bfloat16), w2_ref[...].astype(jnp.bfloat16),
                 preferred_element_type=jnp.float32)                   # (N, out)
    agg2 = jnp.dot(adj_src, hw.astype(jnp.bfloat16),
                   preferred_element_type=jnp.float32)                 # (N, out), f32 acc
    h2 = jnp.maximum(agg2 * dst_norm + b2_ref[...], 0.0)               # (N, out) f32

    # h lane width is 8 (<128) -> masked store; ~4 KiB total, negligible (kept f32).
    h_ref[...] = h2

    # ---- decoder: adj_rec = h2 @ h2.T (act = identity); bf16 operands, f32 accumulate.
    # Same k-order products for [i,j] and [j,i] -> result is exactly symmetric.
    h2_bf = h2.astype(jnp.bfloat16)
    adj_rec_ref[...] = lax.dot_general(h2_bf, h2_bf, (((1,), (1,)), ((), ())),
                                       preferred_element_type=jnp.float32)


def gcn_forward(adj, x, params):
    """Fused GCN forward. Returns (adj_rec (N, N), h (N, out_put))."""
    N, din = x.shape
    h1_dim = params["W1"].shape[1]
    out_dim = params["W2"].shape[1]

    vmem = pl.BlockSpec(memory_space=pltpu.MemorySpace.VMEM)

    flops = (2 * N * N * din            # layer-1 aggregation
             + 2 * N * din * h1_dim     # layer-1 weight matmul
             + 2 * N * h1_dim * out_dim # layer-2 weight matmul
             + 2 * N * N * out_dim      # layer-2 aggregation
             + 2 * N * N * out_dim      # decoder z z^T
             + 3 * N * N)               # degree sums + norm fold
    bytes_accessed = 4 * (2 * N * N + N * (din + 2 * out_dim)
                          + din * h1_dim + h1_dim + h1_dim * out_dim + out_dim)

    adj_rec, h = pl.pallas_call(
        _gcn_fused_kernel,
        out_shape=(jax.ShapeDtypeStruct((N, N), jnp.float32),
                   jax.ShapeDtypeStruct((N, out_dim), jnp.float32)),
        in_specs=[vmem, vmem, vmem, vmem, vmem, vmem],
        out_specs=(vmem, vmem),
        cost_estimate=pl.CostEstimate(flops=flops, transcendentals=2 * N,
                                      bytes_accessed=bytes_accessed),
    )(adj.astype(jnp.float32), x, params["W1"], params["b1"],
      params["W2"], params["b2"])
    return adj_rec, h


def init_gcn_params(key, input_dim, hidden_dim1, out_put):
    """Xavier-uniform weights, zero bias (matches DGL GraphConv reset_parameters)."""
    k1, k2 = jax.random.split(key)

    def xavier(k, fan_in, fan_out):
        bound = (6.0 / (fan_in + fan_out)) ** 0.5
        return jax.random.uniform(k, (fan_in, fan_out), jnp.float32, -bound, bound)

    return dict(
        W1=xavier(k1, input_dim, hidden_dim1),
        b1=jnp.zeros((1, hidden_dim1), jnp.float32),
        W2=xavier(k2, hidden_dim1, out_put),
        b2=jnp.zeros((1, out_put), jnp.float32),
    )


if __name__ == "__main__":
    key = jax.random.PRNGKey(0)

    # GCN(input_dim=16, hidden_dim1=32, out_put=8, feat_drop=0.1) on a 128-node graph.
    N, input_dim, hidden_dim1, out_put = 128, 16, 32, 8

    key, kx, ka, kp = jax.random.split(key, 4)
    inputs = jax.random.normal(kx, (N, input_dim), jnp.float32)

    # Random undirected graph with self-loops (dense adjacency adj[dst, src]).
    a = (jax.random.uniform(ka, (N, N)) < 0.08).astype(jnp.float32)
    adj = jnp.maximum(a, a.T)
    adj = jnp.maximum(adj, jnp.eye(N, dtype=jnp.float32))

    params = init_gcn_params(kp, input_dim, hidden_dim1, out_put)

    adj_rec, h = gcn_forward(adj, inputs, params)
    jax.block_until_ready((adj_rec, h))

    assert adj_rec.shape == (N, N)
    assert h.shape == (N, out_put)
    assert bool(jnp.all(jnp.isfinite(adj_rec))) and bool(jnp.all(jnp.isfinite(h)))
    # decoder output must be symmetric (z @ z.T)
    assert bool(jnp.allclose(adj_rec, adj_rec.T, atol=1e-4))
    print("KERNEL_OK")
</pallas_src>

<mosaic_0001>
module attributes {stable_mosaic.version = 11 : i64} {
  func.func @_gcn_fused_kernel(%arg0: memref<128x128xf32, #tpu.memory_space<vmem>>, %arg1: memref<128x16xf32, #tpu.memory_space<vmem>>, %arg2: memref<16x32xf32, #tpu.memory_space<vmem>>, %arg3: memref<1x32xf32, #tpu.memory_space<vmem>>, %arg4: memref<32x8xf32, #tpu.memory_space<vmem>>, %arg5: memref<1x8xf32, #tpu.memory_space<vmem>>, %arg6: memref<128x128xf32, #tpu.memory_space<vmem>>, %arg7: memref<128x8xf32, #tpu.memory_space<vmem>>) attributes {dimension_semantics = [], scalar_prefetch = 0 : i64, scratch_operands = 0 : i64, tpu.core_type = #tpu.core_type<tc>} {
    %c0 = arith.constant 0 : index
    %c0_0 = arith.constant 0 : index
    %0 = vector.load %arg0[%c0, %c0_0] : memref<128x128xf32, #tpu.memory_space<vmem>>, vector<128x128xf32>
    %cst = arith.constant dense<0.000000e+00> : vector<128xf32>
    %1 = vector.multi_reduction <add>, %0, %cst [1] : vector<128x128xf32> to vector<128xf32>
    %2 = vector.shape_cast %1 : vector<128xf32> to vector<128x1xf32>
    %cst_1 = arith.constant 1.000000e+00 : f32
    %3 = vector.broadcast %cst_1 : f32 to vector<128x1xf32>
    %4 = arith.maximumf %2, %3 : vector<128x1xf32>
    %cst_2 = arith.constant dense<0.000000e+00> : vector<128xf32>
    %5 = vector.multi_reduction <add>, %0, %cst_2 [0] : vector<128x128xf32> to vector<128xf32>
    %6 = vector.shape_cast %5 : vector<128xf32> to vector<1x128xf32>
    %cst_3 = arith.constant 1.000000e+00 : f32
    %7 = vector.broadcast %cst_3 : f32 to vector<1x128xf32>
    %8 = arith.maximumf %6, %7 : vector<1x128xf32>
    %9 = math.rsqrt %4 : vector<128x1xf32>
    %10 = math.rsqrt %8 : vector<1x128xf32>
    %11 = vector.broadcast %10 : vector<1x128xf32> to vector<128x128xf32>
    %12 = arith.mulf %0, %11 : vector<128x128xf32>
    %13 = arith.truncf %12 : vector<128x128xf32> to vector<128x128xbf16>
    %c0_4 = arith.constant 0 : index
    %c0_5 = arith.constant 0 : index
    %14 = vector.load %arg1[%c0_4, %c0_5] : memref<128x16xf32, #tpu.memory_space<vmem>>, vector<128x16xf32>
    %15 = arith.truncf %14 : vector<128x16xf32> to vector<128x16xbf16>
    %cst_6 = arith.constant dense<0.000000e+00> : vector<128x16xf32>
    %16 = tpu.matmul %13, %15, %cst_6 {dimension_numbers = #tpu.dot_dimension_numbers<[1], [0], [0], [1], [0, 0, 1, 1], [], []>} : vector<128x128xbf16>, vector<128x16xbf16>, vector<128x16xf32> -> vector<128x16xf32>
    %17 = vector.broadcast %9 : vector<128x1xf32> to vector<128x16xf32>
    %18 = arith.mulf %16, %17 : vector<128x16xf32>
    %19 = arith.truncf %18 : vector<128x16xf32> to vector<128x16xbf16>
    %c0_7 = arith.constant 0 : index
    %c0_8 = arith.constant 0 : index
    %20 = vector.load %arg2[%c0_7, %c0_8] : memref<16x32xf32, #tpu.memory_space<vmem>>, vector<16x32xf32>
    %21 = arith.truncf %20 : vector<16x32xf32> to vector<16x32xbf16>
    %cst_9 = arith.constant dense<0.000000e+00> : vector<128x32xf32>
    %22 = tpu.matmul %19, %21, %cst_9 {dimension_numbers = #tpu.dot_dimension_numbers<[1], [0], [0], [1], [0, 0, 1, 1], [], []>} : vector<128x16xbf16>, vector<16x32xbf16>, vector<128x32xf32> -> vector<128x32xf32>
    %c0_10 = arith.constant 0 : index
    %c0_11 = arith.constant 0 : index
    %23 = vector.load %arg3[%c0_10, %c0_11] : memref<1x32xf32, #tpu.memory_space<vmem>>, vector<1x32xf32>
    %24 = vector.broadcast %23 : vector<1x32xf32> to vector<128x32xf32>
    %25 = arith.addf %22, %24 : vector<128x32xf32>
    %cst_12 = arith.constant 0.000000e+00 : f32
    %26 = vector.broadcast %cst_12 : f32 to vector<128x32xf32>
    %27 = arith.maximumf %25, %26 : vector<128x32xf32>
    %28 = arith.truncf %27 : vector<128x32xf32> to vector<128x32xbf16>
    %c0_13 = arith.constant 0 : index
    %c0_14 = arith.constant 0 : index
    %29 = vector.load %arg4[%c0_13, %c0_14] : memref<32x8xf32, #tpu.memory_space<vmem>>, vector<32x8xf32>
    %30 = arith.truncf %29 : vector<32x8xf32> to vector<32x8xbf16>
    %cst_15 = arith.constant dense<0.000000e+00> : vector<128x8xf32>
    %31 = tpu.matmul %28, %30, %cst_15 {dimension_numbers = #tpu.dot_dimension_numbers<[1], [0], [0], [1], [0, 0, 1, 1], [], []>} : vector<128x32xbf16>, vector<32x8xbf16>, vector<128x8xf32> -> vector<128x8xf32>
    %32 = arith.truncf %31 : vector<128x8xf32> to vector<128x8xbf16>
    %cst_16 = arith.constant dense<0.000000e+00> : vector<128x8xf32>
    %33 = tpu.matmul %13, %32, %cst_16 {dimension_numbers = #tpu.dot_dimension_numbers<[1], [0], [0], [1], [0, 0, 1, 1], [], []>} : vector<128x128xbf16>, vector<128x8xbf16>, vector<128x8xf32> -> vector<128x8xf32>
    %34 = vector.broadcast %9 : vector<128x1xf32> to vector<128x8xf32>
    %35 = arith.mulf %33, %34 : vector<128x8xf32>
    %c0_17 = arith.constant 0 : index
    %c0_18 = arith.constant 0 : index
    %36 = vector.load %arg5[%c0_17, %c0_18] : memref<1x8xf32, #tpu.memory_space<vmem>>, vector<1x8xf32>
    %37 = vector.broadcast %36 : vector<1x8xf32> to vector<128x8xf32>
    %38 = arith.addf %35, %37 : vector<128x8xf32>
    %cst_19 = arith.constant 0.000000e+00 : f32
    %39 = vector.broadcast %cst_19 : f32 to vector<128x8xf32>
    %40 = arith.maximumf %38, %39 : vector<128x8xf32>
    %c0_20 = arith.constant 0 : index
    %c0_21 = arith.constant 0 : index
    %41 = vector.load %arg7[%c0_20, %c0_21] : memref<128x8xf32, #tpu.memory_space<vmem>>, vector<128x8xf32>
    tpu.vector_store %arg7[%c0_20, %c0_21], %40 {strides = array<i32>} : memref<128x8xf32, #tpu.memory_space<vmem>>, vector<128x8xf32>,
    %42 = arith.truncf %40 : vector<128x8xf32> to vector<128x8xbf16>
    %cst_22 = arith.constant dense<0.000000e+00> : vector<128x128xf32>
    %43 = tpu.matmul %42, %42, %cst_22 {dimension_numbers = #tpu.dot_dimension_numbers<[1], [1], [0], [0], [0, 0, 1, 0], [], []>} : vector<128x8xbf16>, vector<128x8xbf16>, vector<128x128xf32> -> vector<128x128xf32>
    %c0_23 = arith.constant 0 : index
    %c0_24 = arith.constant 0 : index
    %44 = vector.load %arg6[%c0_23, %c0_24] : memref<128x128xf32, #tpu.memory_space<vmem>>, vector<128x128xf32>
    tpu.vector_store %arg6[%c0_23, %c0_24], %43 {strides = array<i32>} : memref<128x128xf32, #tpu.memory_space<vmem>>, vector<128x128xf32>,
    return
  }
}

</mosaic_0001>

<llo_original>
// kernel: tpu_custom_call.1
$region0: #{tpu_custom_call.1}
  #allocation0 [shape = 'u32[]', space=smem, size = 0x4, offset = 0x4, fixed_abs, tag = 'smem constant byte address 0x4 - core index']
  #allocation1 [shape = 'u32[144,128]{1,0:T(1,128)}', space=vmem, size = 0x12000, scoped, tag = 'internal scratch']
  %s0 = inlined_call_operand.vmem [shape: f32[128,128], index: 0, kind: input, shape index: {}]
  %s1 = inlined_call_operand.vmem [shape: f32[128,16], index: 1, kind: input, shape index: {}]
  %s2 = inlined_call_operand.vmem [shape: f32[16,32], index: 2, kind: input, shape index: {}]
  %s3 = inlined_call_operand.vmem [shape: f32[1,32], index: 3, kind: input, shape index: {}]
  %s4 = inlined_call_operand.vmem [shape: f32[32,8], index: 4, kind: input, shape index: {}]
  %s5 = inlined_call_operand.vmem [shape: f32[1,8], index: 5, kind: input, shape index: {}]
  %s6 = inlined_call_operand.hbm [shape: f32[128,128], index: 6, kind: output, shape index: {0}]
  %s7 = inlined_call_operand.vmem [shape: f32[128,8], index: 7, kind: output, shape index: {1}]
  %8 = xla_tuple %s6, %s7
  %s9 = sld [smem:[#allocation0]]
  $region42: #{tpu_custom_call.1} parent=0
    _
  %s11 = ssub.s32 1, %s9
  %s12 = scalar_select 0, %s11, %s9
  $region1: #{tpu_custom_call.1} parent=0
    #allocation2 [shape = 'u8[65536]{0}', space=vmem, size = 0x10000, scoped, tag = 'output window, operand 0, single buffered']
    #allocation3 [shape = 's32[1]{0}', space=sflag, size = 0x4, scoped, tag = 'scoped memory for tpu_custom_call.1']
    %13 = vsyncpa [#allocation3], 0
    // Predicated region
    $region2: #{tpu_custom_call.1} parent=1 // pred_check
      _
    $region3: #{tpu_custom_call.1} parent=1 // pred_check_branch
      %15 = sbr.rel (0) target = $region5
    $region4: #{tpu_custom_call.1} parent=1 // pred_region
      _
    $region5: #{tpu_custom_call.1} parent=1 // pred_fallthru
      _
    // Predicated region
    $region6: #{tpu_custom_call.1} parent=1 // pred_check
      _
    $region7: #{tpu_custom_call.1} parent=1 // pred_check_branch
      %17 = sbr.rel (0) target = $region9
    $region8: #{tpu_custom_call.1} parent=1 // pred_region
      _
    $region9: #{tpu_custom_call.1} parent=1 // pred_fallthru
      _
    // Predicated region
    $region10: #{tpu_custom_call.1} parent=1 // pred_check
      _
    $region11: #{tpu_custom_call.1} parent=1 // pred_check_branch
      %19 = sbr.rel (0) target = $region13
    $region12: #{tpu_custom_call.1} parent=1 // pred_region
      _
    $region13: #{tpu_custom_call.1} parent=1 // pred_fallthru
      _
    // Predicated region
    $region14: #{tpu_custom_call.1} parent=1 // pred_check
      _
    $region15: #{tpu_custom_call.1} parent=1 // pred_check_branch
      %21 = sbr.rel (0) target = $region17
    $region16: #{tpu_custom_call.1} parent=1 // pred_region
      _
    $region17: #{tpu_custom_call.1} parent=1 // pred_fallthru
      _
    // Predicated region
    $region18: #{tpu_custom_call.1} parent=1 // pred_check
      _
    $region19: #{tpu_custom_call.1} parent=1 // pred_check_branch
      %23 = sbr.rel (0) target = $region21
    $region20: #{tpu_custom_call.1} parent=1 // pred_region
      _
    $region21: #{tpu_custom_call.1} parent=1 // pred_fallthru
      _
    // Predicated region
    $region22: #{tpu_custom_call.1} parent=1 // pred_check
      _
    $region23: #{tpu_custom_call.1} parent=1 // pred_check_branch
      %25 = sbr.rel (0) target = $region25
    $region24: #{tpu_custom_call.1} parent=1 // pred_region
      _
    $region25: #{tpu_custom_call.1} parent=1 // pred_fallthru
      _
    %v27 = vld [vmem:[%s0] sm:$0xff]
    %v28 = vld [vmem:[%s0 + $0x8] sm:$0xff]
    %v29 = vld [vmem:[%s0 + $0x10] sm:$0xff]
    %v30 = vld [vmem:[%s0 + $0x18] sm:$0xff]
    %v31 = vld [vmem:[%s0 + $0x20] sm:$0xff]
    %v32 = vld [vmem:[%s0 + $0x28] sm:$0xff]
    %v33 = vld [vmem:[%s0 + $0x30] sm:$0xff]
    %v34 = vld [vmem:[%s0 + $0x38] sm:$0xff]
    %v35 = vld [vmem:[%s0 + $0x40] sm:$0xff]
    %v36 = vld [vmem:[%s0 + $0x48] sm:$0xff]
    %v37 = vld [vmem:[%s0 + $0x50] sm:$0xff]
    %v38 = vld [vmem:[%s0 + $0x58] sm:$0xff]
    %v39 = vld [vmem:[%s0 + $0x60] sm:$0xff]
    %v40 = vld [vmem:[%s0 + $0x68] sm:$0xff]
    %v41 = vld [vmem:[%s0 + $0x70] sm:$0xff]
    %v42 = vld [vmem:[%s0 + $0x78] sm:$0xff]
    %43 = vadd.xlane.f32.xlu0 %v27
    %v44 = vpop.xlane.xlu0 %43
    %45 = vadd.xlane.f32.xlu0 %v28
    %v46 = vpop.xlane.xlu0 %45
    %47 = vadd.xlane.f32.xlu0 %v29
    %v48 = vpop.xlane.xlu0 %47
    %49 = vadd.xlane.f32.xlu0 %v30
    %v50 = vpop.xlane.xlu0 %49
    %51 = vadd.xlane.f32.xlu0 %v31
    %v52 = vpop.xlane.xlu0 %51
    %53 = vadd.xlane.f32.xlu0 %v32
    %v54 = vpop.xlane.xlu0 %53
    %55 = vadd.xlane.f32.xlu0 %v33
    %v56 = vpop.xlane.xlu0 %55
    %57 = vadd.xlane.f32.xlu0 %v34
    %v58 = vpop.xlane.xlu0 %57
    %59 = vadd.xlane.f32.xlu0 %v35
    %v60 = vpop.xlane.xlu0 %59
    %61 = vadd.xlane.f32.xlu0 %v36
    %v62 = vpop.xlane.xlu0 %61
    %63 = vadd.xlane.f32.xlu0 %v37
    %v64 = vpop.xlane.xlu0 %63
    %65 = vadd.xlane.f32.xlu0 %v38
    %v66 = vpop.xlane.xlu0 %65
    %67 = vadd.xlane.f32.xlu0 %v39
    %v68 = vpop.xlane.xlu0 %67
    %69 = vadd.xlane.f32.xlu0 %v40
    %v70 = vpop.xlane.xlu0 %69
    %71 = vadd.xlane.f32.xlu0 %v41
    %v72 = vpop.xlane.xlu0 %71
    %73 = vadd.xlane.f32.xlu0 %v42
    %v74 = vpop.xlane.xlu0 %73
    %v75 = vmax.f32 %v44, 1.0
    %v76 = vmax.f32 %v46, 1.0
    %v77 = vmax.f32 %v48, 1.0
    %v78 = vmax.f32 %v50, 1.0
    %v79 = vmax.f32 %v52, 1.0
    %v80 = vmax.f32 %v54, 1.0
    %v81 = vmax.f32 %v56, 1.0
    %v82 = vmax.f32 %v58, 1.0
    %v83 = vmax.f32 %v60, 1.0
    %v84 = vmax.f32 %v62, 1.0
    %v85 = vmax.f32 %v64, 1.0
    %v86 = vmax.f32 %v66, 1.0
    %v87 = vmax.f32 %v68, 1.0
    %v88 = vmax.f32 %v70, 1.0
    %v89 = vmax.f32 %v72, 1.0
    %v90 = vmax.f32 %v74, 1.0
    %v91 = vadd.f32 %v27, %v28
    %v92 = vadd.f32 %v91, %v29
    %v93 = vadd.f32 %v92, %v30
    %v94 = vadd.f32 %v93, %v31
    %v95 = vadd.f32 %v94, %v32
    %v96 = vadd.f32 %v95, %v33
    %v97 = vadd.f32 %v96, %v34
    %v98 = vadd.f32 %v97, %v35
    %v99 = vadd.f32 %v98, %v36
    %v100 = vadd.f32 %v99, %v37
    %v101 = vadd.f32 %v100, %v38
    %v102 = vadd.f32 %v101, %v39
    %v103 = vadd.f32 %v102, %v40
    %v104 = vadd.f32 %v103, %v41
    %v105 = vadd.f32 %v104, %v42
    %v106 = vrot.slane %v105, 4
    %v107 = vadd.f32 %v105, %v106
    %v108 = vrot.slane %v107, 2
    %v109 = vadd.f32 %v107, %v108
    %v110 = vrot.slane %v109, 1
    %v111 = vadd.f32 %v109, %v110
    %v112 = vmax.f32 %v111, 1.0
    %v113 = vrsqrt.pop %v75
    %v114 = vrsqrt.pop %v76
    %v115 = vrsqrt.pop %v77
    %v116 = vrsqrt.pop %v78
    %v117 = vrsqrt.pop %v79
    %v118 = vrsqrt.pop %v80
    %v119 = vrsqrt.pop %v81
    %v120 = vrsqrt.pop %v82
    %v121 = vrsqrt.pop %v83
    %v122 = vrsqrt.pop %v84
    %v123 = vrsqrt.pop %v85
    %v124 = vrsqrt.pop %v86
    %v125 = vrsqrt.pop %v87
    %v126 = vrsqrt.pop %v88
    %v127 = vrsqrt.pop %v89
    %v128 = vrsqrt.pop %v90
    %v129 = vrsqrt.pop %v112
    %v130 = vmul.f32 %v27, %v129
    %v131 = vmul.f32 %v28, %v129
    %v132 = vmul.f32 %v29, %v129
    %v133 = vmul.f32 %v30, %v129
    %v134 = vmul.f32 %v31, %v129
    %v135 = vmul.f32 %v32, %v129
    %v136 = vmul.f32 %v33, %v129
    %v137 = vmul.f32 %v34, %v129
    %v138 = vmul.f32 %v35, %v129
    %v139 = vmul.f32 %v36, %v129
    %v140 = vmul.f32 %v37, %v129
    %v141 = vmul.f32 %v38, %v129
    %v142 = vmul.f32 %v39, %v129
    %v143 = vmul.f32 %v40, %v129
    %v144 = vmul.f32 %v41, %v129
    %v145 = vmul.f32 %v42, %v129
    %v146 = vpack.c.bf16 %v131, %v130
    %v147 = vpack.c.bf16 %v133, %v132
    %v148 = vpack.c.bf16 %v135, %v134
    %v149 = vpack.c.bf16 %v137, %v136
    %v150 = vpack.c.bf16 %v139, %v138
    %v151 = vpack.c.bf16 %v141, %v140
    %v152 = vpack.c.bf16 %v143, %v142
    %v153 = vpack.c.bf16 %v145, %v144
    %v154 = vld [vmem:[%s1] sm:$0xff]
    %v155 = vld [vmem:[%s1 + $0x8] sm:$0xff]
    %v156 = vld [vmem:[%s1 + $0x10] sm:$0xff]
    %v157 = vld [vmem:[%s1 + $0x18] sm:$0xff]
    %v158 = vld [vmem:[%s1 + $0x20] sm:$0xff]
    %v159 = vld [vmem:[%s1 + $0x28] sm:$0xff]
    %v160 = vld [vmem:[%s1 + $0x30] sm:$0xff]
    %v161 = vld [vmem:[%s1 + $0x38] sm:$0xff]
    %v162 = vld [vmem:[%s1 + $0x40] sm:$0xff]
    %v163 = vld [vmem:[%s1 + $0x48] sm:$0xff]
    %v164 = vld [vmem:[%s1 + $0x50] sm:$0xff]
    %v165 = vld [vmem:[%s1 + $0x58] sm:$0xff]
    %v166 = vld [vmem:[%s1 + $0x60] sm:$0xff]
    %v167 = vld [vmem:[%s1 + $0x68] sm:$0xff]
    %v168 = vld [vmem:[%s1 + $0x70] sm:$0xff]
    %v169 = vld [vmem:[%s1 + $0x78] sm:$0xff]
    %v170 = vpack.c.bf16 %v155, %v154
    %v171 = vpack.c.bf16 %v157, %v156
    %v172 = vpack.c.bf16 %v159, %v158
    %v173 = vpack.c.bf16 %v161, %v160
    %v174 = vpack.c.bf16 %v163, %v162
    %v175 = vpack.c.bf16 %v165, %v164
    %v176 = vpack.c.bf16 %v167, %v166
    %v177 = vpack.c.bf16 %v169, %v168
    %178 = vmatprep.subr.bf16.mxu0 0
    %179 = vmatpush1.bf16.msra.mxu0 %v170
    %180 = vmatprep.subr.bf16.mxu0 0
    %181 = vmatpush1.bf16.msra.mxu0 %v171
    %182 = vmatprep.subr.bf16.mxu0 0
    %183 = vmatpush1.bf16.msra.mxu0 %v172
    %184 = vmatprep.subr.bf16.mxu0 0
    %185 = vmatpush1.bf16.msra.mxu0 %v173
    %186 = vmatprep.subr.bf16.mxu0 0
    %187 = vmatpush1.bf16.msra.mxu0 %v174
    %188 = vmatprep.subr.bf16.mxu0 0
    %189 = vmatpush1.bf16.msra.mxu0 %v175
    %190 = vmatprep.subr.bf16.mxu0 0
    %191 = vmatpush1.bf16.msra.mxu0 %v176
    %192 = vmatprep.subr.bf16.mxu0 0
    %193 = vmatpush1.bf16.msra.mxu0 %v177
    %194 = vmatprep.subr.bf16.mxu0 0
    %195 = vmatpush1.bf16.msra.mxu0 0
    %196 = vmatprep.subr.bf16.mxu0 0
    %197 = vmatpush1.bf16.msra.mxu0 0
    %198 = vmatprep.subr.bf16.mxu0 0
    %199 = vmatpush1.bf16.msra.mxu0 0
    %200 = vmatprep.subr.bf16.mxu0 0
    %201 = vmatpush1.bf16.msra.mxu0 0
    %202 = vmatprep.subr.bf16.mxu0 0
    %203 = vmatpush1.bf16.msra.mxu0 0
    %204 = vmatprep.subr.bf16.mxu0 0
    %205 = vmatpush1.bf16.msra.mxu0 0
    %206 = vmatprep.subr.bf16.mxu0 0
    %207 = vmatpush1.bf16.msra.mxu0 0
    %208 = vmatprep.subr.bf16.mxu0 0
    %209 = vmatpush1.bf16.msra.mxu0 0
    %210 = vmatprep.mubr.bf16.mxu0 0
    %211 = vmatmul.mubr.bf16.gmra.mrb[0].mxu0 %v146
    %v212 = vpop.f32.mrb[0].mxu0
    %v213 = vadd.f32 0.0, %v212
    %v214 = vpop.f32.mrb[0].mxu0
    %v215 = vpop.f32.mrb[0].mxu0
    %v216 = vadd.f32 0.0, %v215
    %v217 = vpop.f32.mrb[0].mxu0
    %218 = vmatprep.mubr.bf16.mxu0 0
    %219 = vmatmul.mubr.bf16.gmra.mrb[0].mxu0 %v147
    %v220 = vpop.f32.mrb[0].mxu0
    %v221 = vadd.f32 0.0, %v220
    %v222 = vpop.f32.mrb[0].mxu0
    %v223 = vpop.f32.mrb[0].mxu0
    %v224 = vadd.f32 0.0, %v223
    %v225 = vpop.f32.mrb[0].mxu0
    %226 = vmatprep.mubr.bf16.mxu0 0
    %227 = vmatmul.mubr.bf16.gmra.mrb[0].mxu0 %v148
    %v228 = vpop.f32.mrb[0].mxu0
    %v229 = vadd.f32 0.0, %v228
    %v230 = vpop.f32.mrb[0].mxu0
    %v231 = vpop.f32.mrb[0].mxu0
    %v232 = vadd.f32 0.0, %v231
    %v233 = vpop.f32.mrb[0].mxu0
    %234 = vmatprep.mubr.bf16.mxu0 0
    %235 = vmatmul.mubr.bf16.gmra.mrb[0].mxu0 %v149
    %v236 = vpop.f32.mrb[0].mxu0
    %v237 = vadd.f32 0.0, %v236
    %v238 = vpop.f32.mrb[0].mxu0
    %v239 = vpop.f32.mrb[0].mxu0
    %v240 = vadd.f32 0.0, %v239
    %v241 = vpop.f32.mrb[0].mxu0
    %242 = vmatprep.mubr.bf16.mxu0 0
    %243 = vmatmul.mubr.bf16.gmra.mrb[0].mxu0 %v150
    %v244 = vpop.f32.mrb[0].mxu0
    %v245 = vadd.f32 0.0, %v244
    %v246 = vpop.f32.mrb[0].mxu0
    %v247 = vpop.f32.mrb[0].mxu0
    %v248 = vadd.f32 0.0, %v247
    %v249 = vpop.f32.mrb[0].mxu0
    %250 = vmatprep.mubr.bf16.mxu0 0
    %251 = vmatmul.mubr.bf16.gmra.mrb[0].mxu0 %v151
    %v252 = vpop.f32.mrb[0].mxu0
    %v253 = vadd.f32 0.0, %v252
    %v254 = vpop.f32.mrb[0].mxu0
    %v255 = vpop.f32.mrb[0].mxu0
    %v256 = vadd.f32 0.0, %v255
    %v257 = vpop.f32.mrb[0].mxu0
    %258 = vmatprep.mubr.bf16.mxu0 0
    %259 = vmatmul.mubr.bf16.gmra.mrb[0].mxu0 %v152
    %v260 = vpop.f32.mrb[0].mxu0
    %v261 = vadd.f32 0.0, %v260
    %v262 = vpop.f32.mrb[0].mxu0
    %v263 = vpop.f32.mrb[0].mxu0
    %v264 = vadd.f32 0.0, %v263
    %v265 = vpop.f32.mrb[0].mxu0
    %266 = vmatprep.mubr.bf16.mxu0 0
    %267 = vmatmul.mubr.bf16.gmra.mrb[0].mxu0 %v153
    %v268 = vpop.f32.mrb[0].mxu0
    %v269 = vadd.f32 0.0, %v268
    %v270 = vpop.f32.mrb[0].mxu0
    %v271 = vpop.f32.mrb[0].mxu0
    %v272 = vadd.f32 0.0, %v271
    %v273 = vpop.f32.mrb[0].mxu0
    %274 = vdwg.mxu0
    %v275 = vmul.f32 %v213, %v113
    %v276 = vmul.f32 %v216, %v114
    %v277 = vmul.f32 %v221, %v115
    %v278 = vmul.f32 %v224, %v116
    %v279 = vmul.f32 %v229, %v117
    %v280 = vmul.f32 %v232, %v118
    %v281 = vmul.f32 %v237, %v119
    %v282 = vmul.f32 %v240, %v120
    %v283 = vmul.f32 %v245, %v121
    %v284 = vmul.f32 %v248, %v122
    %v285 = vmul.f32 %v253, %v123
    %v286 = vmul.f32 %v256, %v124
    %v287 = vmul.f32 %v261, %v125
    %v288 = vmul.f32 %v264, %v126
    %v289 = vmul.f32 %v269, %v127
    %v290 = vmul.f32 %v272, %v128
    %v291 = vpack.c.bf16 %v276, %v275
    %v292 = vpack.c.bf16 %v278, %v277
    %v293 = vpack.c.bf16 %v280, %v279
    %v294 = vpack.c.bf16 %v282, %v281
    %v295 = vpack.c.bf16 %v284, %v283
    %v296 = vpack.c.bf16 %v286, %v285
    %v297 = vpack.c.bf16 %v288, %v287
    %v298 = vpack.c.bf16 %v290, %v289
    %v299 = vld [vmem:[%s2] sm:$0xff]
    %v300 = vld [vmem:[%s2 + $0x8] sm:$0xff]
    %v301 = vpack.c.bf16 %v300, %v299
    %v302 = vld [vmem:[%s3] sm:$0x1]
    %v304 = vlaneseq
    %v305 = vshrl.u32 %v304, 7
    %v306 = vsub.s32 0, %v305
    %v307 = vrot.slane %v302, %v306
    %vm309 = vcmask 130048
    %v311 = vsel %vm309, %v291, 0
    %v314 = vsel %vm309, %v292, 0
    %v317 = vsel %vm309, %v293, 0
    %v320 = vsel %vm309, %v294, 0
    %v323 = vsel %vm309, %v295, 0
    %v326 = vsel %vm309, %v296, 0
    %v329 = vsel %vm309, %v297, 0
    %v332 = vsel %vm309, %v298, 0
    %334 = vmatprep.subr.bf16.mxu0 0
    %335 = vmatpush1.bf16.msra.mxu0 %v301
    %336 = vmatprep.subr.bf16.mxu0 0
    %337 = vmatpush1.bf16.msra.mxu0 0
    %338 = vmatprep.subr.bf16.mxu0 0
    %339 = vmatpush1.bf16.msra.mxu0 0
    %340 = vmatprep.subr.bf16.mxu0 0
    %341 = vmatpush1.bf16.msra.mxu0 0
    %342 = vmatprep.subr.bf16.mxu0 0
    %343 = vmatpush1.bf16.msra.mxu0 0
    %344 = vmatprep.subr.bf16.mxu0 0
    %345 = vmatpush1.bf16.msra.mxu0 0
    %346 = vmatprep.subr.bf16.mxu0 0
    %347 = vmatpush1.bf16.msra.mxu0 0
    %348 = vmatprep.subr.bf16.mxu0 0
    %349 = vmatpush1.bf16.msra.mxu0 0
    %350 = vmatprep.subr.bf16.mxu0 0
    %351 = vmatpush1.bf16.msra.mxu0 0
    %352 = vmatprep.subr.bf16.mxu0 0
    %353 = vmatpush1.bf16.msra.mxu0 0
    %354 = vmatprep.subr.bf16.mxu0 0
    %355 = vmatpush1.bf16.msra.mxu0 0
    %356 = vmatprep.subr.bf16.mxu0 0
    %357 = vmatpush1.bf16.msra.mxu0 0
    %358 = vmatprep.subr.bf16.mxu0 0
    %359 = vmatpush1.bf16.msra.mxu0 0
    %360 = vmatprep.subr.bf16.mxu0 0
    %361 = vmatpush1.bf16.msra.mxu0 0
    %362 = vmatprep.subr.bf16.mxu0 0
    %363 = vmatpush1.bf16.msra.mxu0 0
    %364 = vmatprep.subr.bf16.mxu0 0
    %365 = vmatpush1.bf16.msra.mxu0 0
    %366 = vmatprep.mubr.bf16.mxu0 0
    %367 = vmatmul.mubr.bf16.gmra.mrb[0].mxu0 %v311
    %v368 = vpop.f32.mrb[0].mxu0
    %v369 = vadd.f32 %v307, %v368
    %v370 = vpop.f32.mrb[0].mxu0
    %v371 = vpop.f32.mrb[0].mxu0
    %v372 = vadd.f32 %v307, %v371
    %v373 = vpop.f32.mrb[0].mxu0
    %374 = vmatprep.mubr.bf16.mxu0 0
    %375 = vmatmul.mubr.bf16.gmra.mrb[0].mxu0 %v314
    %v376 = vpop.f32.mrb[0].mxu0
    %v377 = vadd.f32 %v307, %v376
    %v378 = vpop.f32.mrb[0].mxu0
    %v379 = vpop.f32.mrb[0].mxu0
    %v380 = vadd.f32 %v307, %v379
    %v381 = vpop.f32.mrb[0].mxu0
    %382 = vmatprep.mubr.bf16.mxu0 0
    %383 = vmatmul.mubr.bf16.gmra.mrb[0].mxu0 %v317
    %v384 = vpop.f32.mrb[0].mxu0
    %v385 = vadd.f32 %v307, %v384
    %v386 = vpop.f32.mrb[0].mxu0
    %v387 = vpop.f32.mrb[0].mxu0
    %v388 = vadd.f32 %v307, %v387
    %v389 = vpop.f32.mrb[0].mxu0
    %390 = vmatprep.mubr.bf16.mxu0 0
    %391 = vmatmul.mubr.bf16.gmra.mrb[0].mxu0 %v320
    %v392 = vpop.f32.mrb[0].mxu0
    %v393 = vadd.f32 %v307, %v392
    %v394 = vpop.f32.mrb[0].mxu0
    %v395 = vpop.f32.mrb[0].mxu0
    %v396 = vadd.f32 %v307, %v395
    %v397 = vpop.f32.mrb[0].mxu0
    %398 = vmatprep.mubr.bf16.mxu0 0
    %399 = vmatmul.mubr.bf16.gmra.mrb[0].mxu0 %v323
    %v400 = vpop.f32.mrb[0].mxu0
    %v401 = vadd.f32 %v307, %v400
    %v402 = vpop.f32.mrb[0].mxu0
    %v403 = vpop.f32.mrb[0].mxu0
    %v404 = vadd.f32 %v307, %v403
    %v405 = vpop.f32.mrb[0].mxu0
    %406 = vmatprep.mubr.bf16.mxu0 0
    %407 = vmatmul.mubr.bf16.gmra.mrb[0].mxu0 %v326
    %v408 = vpop.f32.mrb[0].mxu0
    %v409 = vadd.f32 %v307, %v408
    %v410 = vpop.f32.mrb[0].mxu0
    %v411 = vpop.f32.mrb[0].mxu0
    %v412 = vadd.f32 %v307, %v411
    %v413 = vpop.f32.mrb[0].mxu0
    %414 = vmatprep.mubr.bf16.mxu0 0
    %415 = vmatmul.mubr.bf16.gmra.mrb[0].mxu0 %v329
    %v416 = vpop.f32.mrb[0].mxu0
    %v417 = vadd.f32 %v307, %v416
    %v418 = vpop.f32.mrb[0].mxu0
    %v419 = vpop.f32.mrb[0].mxu0
    %v420 = vadd.f32 %v307, %v419
    %v421 = vpop.f32.mrb[0].mxu0
    %422 = vmatprep.mubr.bf16.mxu0 0
    %423 = vmatmul.mubr.bf16.gmra.mrb[0].mxu0 %v332
    %v424 = vpop.f32.mrb[0].mxu0
    %v425 = vadd.f32 %v307, %v424
    %v426 = vpop.f32.mrb[0].mxu0
    %v427 = vpop.f32.mrb[0].mxu0
    %v428 = vadd.f32 %v307, %v427
    %v429 = vpop.f32.mrb[0].mxu0
    %430 = vdwg.mxu0
    %v431 = vmax.f32 %v369, 0.0
    %v432 = vmax.f32 %v372, 0.0
    %v433 = vmax.f32 %v377, 0.0
    %v434 = vmax.f32 %v380, 0.0
    %v435 = vmax.f32 %v385, 0.0
    %v436 = vmax.f32 %v388, 0.0
    %v437 = vmax.f32 %v393, 0.0
    %v438 = vmax.f32 %v396, 0.0
    %v439 = vmax.f32 %v401, 0.0
    %v440 = vmax.f32 %v404, 0.0
    %v441 = vmax.f32 %v409, 0.0
    %v442 = vmax.f32 %v412, 0.0
    %v443 = vmax.f32 %v417, 0.0
    %v444 = vmax.f32 %v420, 0.0
    %v445 = vmax.f32 %v425, 0.0
    %v446 = vmax.f32 %v428, 0.0
    %v447 = vpack.c.bf16 %v432, %v431
    %v448 = vpack.c.bf16 %v434, %v433
    %v449 = vpack.c.bf16 %v436, %v435
    %v450 = vpack.c.bf16 %v438, %v437
    %v451 = vpack.c.bf16 %v440, %v439
    %v452 = vpack.c.bf16 %v442, %v441
    %v453 = vpack.c.bf16 %v444, %v443
    %v454 = vpack.c.bf16 %v446, %v445
    %v455 = vld [vmem:[%s4] sm:$0xff]
    %v456 = vld [vmem:[%s4 + $0x8] sm:$0xff]
    %v457 = vld [vmem:[%s4 + $0x10] sm:$0xff]
    %v458 = vld [vmem:[%s4 + $0x18] sm:$0xff]
    %v459 = vpack.c.bf16 %v456, %v455
    %v460 = vpack.c.bf16 %v458, %v457
    %vm461 = vcmask 261120
    %v463 = vsel %vm461, %v447, 0
    %v466 = vsel %vm461, %v448, 0
    %v469 = vsel %vm461, %v449, 0
    %v472 = vsel %vm461, %v450, 0
    %v475 = vsel %vm461, %v451, 0
    %v478 = vsel %vm461, %v452, 0
    %v481 = vsel %vm461, %v453, 0
    %v484 = vsel %vm461, %v454, 0
    %486 = vmatprep.subr.bf16.mxu0 0
    %487 = vmatpush1.bf16.msra.mxu0 %v459
    %488 = vmatprep.subr.bf16.mxu0 0
    %489 = vmatpush1.bf16.msra.mxu0 %v460
    %490 = vmatprep.subr.bf16.mxu0 0
    %491 = vmatpush1.bf16.msra.mxu0 0
    %492 = vmatprep.subr.bf16.mxu0 0
    %493 = vmatpush1.bf16.msra.mxu0 0
    %494 = vmatprep.subr.bf16.mxu0 0
    %495 = vmatpush1.bf16.msra.mxu0 0
    %496 = vmatprep.subr.bf16.mxu0 0
    %497 = vmatpush1.bf16.msra.mxu0 0
    %498 = vmatprep.subr.bf16.mxu0 0
    %499 = vmatpush1.bf16.msra.mxu0 0
    %500 = vmatprep.subr.bf16.mxu0 0
    %501 = vmatpush1.bf16.msra.mxu0 0
    %502 = vmatprep.subr.bf16.mxu0 0
    %503 = vmatpush1.bf16.msra.mxu0 0
    %504 = vmatprep.subr.bf16.mxu0 0
    %505 = vmatpush1.bf16.msra.mxu0 0
    %506 = vmatprep.subr.bf16.mxu0 0
    %507 = vmatpush1.bf16.msra.mxu0 0
    %508 = vmatprep.subr.bf16.mxu0 0
    %509 = vmatpush1.bf16.msra.mxu0 0
    %510 = vmatprep.subr.bf16.mxu0 0
    %511 = vmatpush1.bf16.msra.mxu0 0
    %512 = vmatprep.subr.bf16.mxu0 0
    %513 = vmatpush1.bf16.msra.mxu0 0
    %514 = vmatprep.subr.bf16.mxu0 0
    %515 = vmatpush1.bf16.msra.mxu0 0
    %516 = vmatprep.subr.bf16.mxu0 0
    %517 = vmatpush1.bf16.msra.mxu0 0
    %518 = vmatprep.mubr.bf16.mxu0 0
    %519 = vmatmul.mubr.bf16.gmra.mrb[0].mxu0 %v463
    %v520 = vpop.f32.mrb[0].mxu0
    %v521 = vadd.f32 0.0, %v520
    %v522 = vpop.f32.mrb[0].mxu0
    %v523 = vpop.f32.mrb[0].mxu0
    %v524 = vadd.f32 0.0, %v523
    %v525 = vpop.f32.mrb[0].mxu0
    %526 = vmatprep.mubr.bf16.mxu0 0
    %527 = vmatmul.mubr.bf16.gmra.mrb[0].mxu0 %v466
    %v528 = vpop.f32.mrb[0].mxu0
    %v529 = vadd.f32 0.0, %v528
    %v530 = vpop.f32.mrb[0].mxu0
    %v531 = vpop.f32.mrb[0].mxu0
    %v532 = vadd.f32 0.0, %v531
    %v533 = vpop.f32.mrb[0].mxu0
    %534 = vmatprep.mubr.bf16.mxu0 0
    %535 = vmatmul.mubr.bf16.gmra.mrb[0].mxu0 %v469
    %v536 = vpop.f32.mrb[0].mxu0
    %v537 = vadd.f32 0.0, %v536
    %v538 = vpop.f32.mrb[0].mxu0
    %v539 = vpop.f32.mrb[0].mxu0
    %v540 = vadd.f32 0.0, %v539
    %v541 = vpop.f32.mrb[0].mxu0
    %542 = vmatprep.mubr.bf16.mxu0 0
    %543 = vmatmul.mubr.bf16.gmra.mrb[0].mxu0 %v472
    %v544 = vpop.f32.mrb[0].mxu0
    %v545 = vadd.f32 0.0, %v544
    %v546 = vpop.f32.mrb[0].mxu0
    %v547 = vpop.f32.mrb[0].mxu0
    %v548 = vadd.f32 0.0, %v547
    %v549 = vpop.f32.mrb[0].mxu0
    %550 = vmatprep.mubr.bf16.mxu0 0
    %551 = vmatmul.mubr.bf16.gmra.mrb[0].mxu0 %v475
    %v552 = vpop.f32.mrb[0].mxu0
    %v553 = vadd.f32 0.0, %v552
    %v554 = vpop.f32.mrb[0].mxu0
    %v555 = vpop.f32.mrb[0].mxu0
    %v556 = vadd.f32 0.0, %v555
    %v557 = vpop.f32.mrb[0].mxu0
    %558 = vmatprep.mubr.bf16.mxu0 0
    %559 = vmatmul.mubr.bf16.gmra.mrb[0].mxu0 %v478
    %v560 = vpop.f32.mrb[0].mxu0
    %v561 = vadd.f32 0.0, %v560
    %v562 = vpop.f32.mrb[0].mxu0
    %v563 = vpop.f32.mrb[0].mxu0
    %v564 = vadd.f32 0.0, %v563
    %v565 = vpop.f32.mrb[0].mxu0
    %566 = vmatprep.mubr.bf16.mxu0 0
    %567 = vmatmul.mubr.bf16.gmra.mrb[0].mxu0 %v481
    %v568 = vpop.f32.mrb[0].mxu0
    %v569 = vadd.f32 0.0, %v568
    %v570 = vpop.f32.mrb[0].mxu0
    %v571 = vpop.f32.mrb[0].mxu0
    %v572 = vadd.f32 0.0, %v571
    %v573 = vpop.f32.mrb[0].mxu0
    %574 = vmatprep.mubr.bf16.mxu0 0
    %575 = vmatmul.mubr.bf16.gmra.mrb[0].mxu0 %v484
    %v576 = vpop.f32.mrb[0].mxu0
    %v577 = vadd.f32 0.0, %v576
    %v578 = vpop.f32.mrb[0].mxu0
    %v579 = vpop.f32.mrb[0].mxu0
    %v580 = vadd.f32 0.0, %v579
    %v581 = vpop.f32.mrb[0].mxu0
    %582 = vdwg.mxu0
    %v583 = vpack.c.bf16 %v524, %v521
    %v584 = vpack.c.bf16 %v532, %v529
    %v585 = vpack.c.bf16 %v540, %v537
    %v586 = vpack.c.bf16 %v548, %v545
    %v587 = vpack.c.bf16 %v556, %v553
    %v588 = vpack.c.bf16 %v564, %v561
    %v589 = vpack.c.bf16 %v572, %v569
    %v590 = vpack.c.bf16 %v580, %v577
    %591 = vmatprep.subr.bf16.mxu0 0
    %592 = vmatpush1.bf16.msra.mxu0 %v583
    %593 = vmatprep.subr.bf16.mxu0 0
    %594 = vmatpush1.bf16.msra.mxu0 %v584
    %595 = vmatprep.subr.bf16.mxu0 0
    %596 = vmatpush1.bf16.msra.mxu0 %v585
    %597 = vmatprep.subr.bf16.mxu0 0
    %598 = vmatpush1.bf16.msra.mxu0 %v586
    %599 = vmatprep.subr.bf16.mxu0 0
    %600 = vmatpush1.bf16.msra.mxu0 %v587
    %601 = vmatprep.subr.bf16.mxu0 0
    %602 = vmatpush1.bf16.msra.mxu0 %v588
    %603 = vmatprep.subr.bf16.mxu0 0
    %604 = vmatpush1.bf16.msra.mxu0 %v589
    %605 = vmatprep.subr.bf16.mxu0 0
    %606 = vmatpush1.bf16.msra.mxu0 %v590
    %607 = vmatprep.subr.bf16.mxu0 0
    %608 = vmatpush1.bf16.msra.mxu0 0
    %609 = vmatprep.subr.bf16.mxu0 0
    %610 = vmatpush1.bf16.msra.mxu0 0
    %611 = vmatprep.subr.bf16.mxu0 0
    %612 = vmatpush1.bf16.msra.mxu0 0
    %613 = vmatprep.subr.bf16.mxu0 0
    %614 = vmatpush1.bf16.msra.mxu0 0
    %615 = vmatprep.subr.bf16.mxu0 0
    %616 = vmatpush1.bf16.msra.mxu0 0
    %617 = vmatprep.subr.bf16.mxu0 0
    %618 = vmatpush1.bf16.msra.mxu0 0
    %619 = vmatprep.subr.bf16.mxu0 0
    %620 = vmatpush1.bf16.msra.mxu0 0
    %621 = vmatprep.subr.bf16.mxu0 0
    %622 = vmatpush1.bf16.msra.mxu0 0
    %623 = vmatprep.mubr.bf16.mxu0 0
    %624 = vmatmul.mubr.bf16.gmra.mrb[0].mxu0 %v146
    %v625 = vpop.f32.mrb[0].mxu0
    %v626 = vadd.f32 0.0, %v625
    %v627 = vpop.f32.mrb[0].mxu0
    %v628 = vpop.f32.mrb[0].mxu0
    %v629 = vadd.f32 0.0, %v628
    %v630 = vpop.f32.mrb[0].mxu0
    %631 = vmatprep.mubr.bf16.mxu0 0
    %632 = vmatmul.mubr.bf16.gmra.mrb[0].mxu0 %v147
    %v633 = vpop.f32.mrb[0].mxu0
    %v634 = vadd.f32 0.0, %v633
    %v635 = vpop.f32.mrb[0].mxu0
    %v636 = vpop.f32.mrb[0].mxu0
    %v637 = vadd.f32 0.0, %v636
    %v638 = vpop.f32.mrb[0].mxu0
    %639 = vmatprep.mubr.bf16.mxu0 0
    %640 = vmatmul.mubr.bf16.gmra.mrb[0].mxu0 %v148
    %v641 = vpop.f32.mrb[0].mxu0
    %v642 = vadd.f32 0.0, %v641
    %v643 = vpop.f32.mrb[0].mxu0
    %v644 = vpop.f32.mrb[0].mxu0
    %v645 = vadd.f32 0.0, %v644
    %v646 = vpop.f32.mrb[0].mxu0
    %647 = vmatprep.mubr.bf16.mxu0 0
    %648 = vmatmul.mubr.bf16.gmra.mrb[0].mxu0 %v149
    %v649 = vpop.f32.mrb[0].mxu0
    %v650 = vadd.f32 0.0, %v649
    %v651 = vpop.f32.mrb[0].mxu0
    %v652 = vpop.f32.mrb[0].mxu0
    %v653 = vadd.f32 0.0, %v652
    %v654 = vpop.f32.mrb[0].mxu0
    %655 = vmatprep.mubr.bf16.mxu0 0
    %656 = vmatmul.mubr.bf16.gmra.mrb[0].mxu0 %v150
    %v657 = vpop.f32.mrb[0].mxu0
    %v658 = vadd.f32 0.0, %v657
    %v659 = vpop.f32.mrb[0].mxu0
    %v660 = vpop.f32.mrb[0].mxu0
    %v661 = vadd.f32 0.0, %v660
    %v662 = vpop.f32.mrb[0].mxu0
    %663 = vmatprep.mubr.bf16.mxu0 0
    %664 = vmatmul.mubr.bf16.gmra.mrb[0].mxu0 %v151
    %v665 = vpop.f32.mrb[0].mxu0
    %v666 = vadd.f32 0.0, %v665
    %v667 = vpop.f32.mrb[0].mxu0
    %v668 = vpop.f32.mrb[0].mxu0
    %v669 = vadd.f32 0.0, %v668
    %v670 = vpop.f32.mrb[0].mxu0
    %671 = vmatprep.mubr.bf16.mxu0 0
    %672 = vmatmul.mubr.bf16.gmra.mrb[0].mxu0 %v152
    %v673 = vpop.f32.mrb[0].mxu0
    %v674 = vadd.f32 0.0, %v673
    %v675 = vpop.f32.mrb[0].mxu0
    %v676 = vpop.f32.mrb[0].mxu0
    %v677 = vadd.f32 0.0, %v676
    %v678 = vpop.f32.mrb[0].mxu0
    %679 = vmatprep.mubr.bf16.mxu0 0
    %680 = vmatmul.mubr.bf16.gmra.mrb[0].mxu0 %v153
    %v681 = vpop.f32.mrb[0].mxu0
    %v682 = vadd.f32 0.0, %v681
    %v683 = vpop.f32.mrb[0].mxu0
    %v684 = vpop.f32.mrb[0].mxu0
    %v685 = vadd.f32 0.0, %v684
    %v686 = vpop.f32.mrb[0].mxu0
    %687 = vdwg.mxu0
    %v688 = vmul.f32 %v626, %v113
    %v689 = vmul.f32 %v629, %v114
    %v690 = vmul.f32 %v634, %v115
    %v691 = vmul.f32 %v637, %v116
    %v692 = vmul.f32 %v642, %v117
    %v693 = vmul.f32 %v645, %v118
    %v694 = vmul.f32 %v650, %v119
    %v695 = vmul.f32 %v653, %v120
    %v696 = vmul.f32 %v658, %v121
    %v697 = vmul.f32 %v661, %v122
    %v698 = vmul.f32 %v666, %v123
    %v699 = vmul.f32 %v669, %v124
    %v700 = vmul.f32 %v674, %v125
    %v701 = vmul.f32 %v677, %v126
    %v702 = vmul.f32 %v682, %v127
    %v703 = vmul.f32 %v685, %v128
    %v704 = vld [vmem:[%s5] sm:$0x1]
    %v706 = vlaneseq
    %v707 = vshrl.u32 %v706, 7
    %v708 = vsub.s32 0, %v707
    %v709 = vrot.slane %v704, %v708
    %v711 = vadd.f32 %v688, %v709
    %v712 = vadd.f32 %v689, %v709
    %v713 = vadd.f32 %v690, %v709
    %v714 = vadd.f32 %v691, %v709
    %v715 = vadd.f32 %v692, %v709
    %v716 = vadd.f32 %v693, %v709
    %v717 = vadd.f32 %v694, %v709
    %v718 = vadd.f32 %v695, %v709
    %v719 = vadd.f32 %v696, %v709
    %v720 = vadd.f32 %v697, %v709
    %v721 = vadd.f32 %v698, %v709
    %v722 = vadd.f32 %v699, %v709
    %v723 = vadd.f32 %v700, %v709
    %v724 = vadd.f32 %v701, %v709
    %v725 = vadd.f32 %v702, %v709
    %v726 = vadd.f32 %v703, %v709
    %v727 = vmax.f32 %v711, 0.0
    %v728 = vmax.f32 %v712, 0.0
    %v729 = vmax.f32 %v713, 0.0
    %v730 = vmax.f32 %v714, 0.0
    %v731 = vmax.f32 %v715, 0.0
    %v732 = vmax.f32 %v716, 0.0
    %v733 = vmax.f32 %v717, 0.0
    %v734 = vmax.f32 %v718, 0.0
    %v735 = vmax.f32 %v719, 0.0
    %v736 = vmax.f32 %v720, 0.0
    %v737 = vmax.f32 %v721, 0.0
    %v738 = vmax.f32 %v722, 0.0
    %v739 = vmax.f32 %v723, 0.0
    %v740 = vmax.f32 %v724, 0.0
    %v741 = vmax.f32 %v725, 0.0
    %v742 = vmax.f32 %v726, 0.0
    %vm743 = vcmask 64512
    %744 = vst.msk [vmem:[%s7] sm:$0xff] %vm743, %v727
    %745 = vst.msk [vmem:[%s7 + $0x8] sm:$0xff] %vm743, %v728
    %746 = vst.msk [vmem:[%s7 + $0x10] sm:$0xff] %vm743, %v729
    %747 = vst.msk [vmem:[%s7 + $0x18] sm:$0xff] %vm743, %v730
    %748 = vst.msk [vmem:[%s7 + $0x20] sm:$0xff] %vm743, %v731
    %749 = vst.msk [vmem:[%s7 + $0x28] sm:$0xff] %vm743, %v732
    %750 = vst.msk [vmem:[%s7 + $0x30] sm:$0xff] %vm743, %v733
    %751 = vst.msk [vmem:[%s7 + $0x38] sm:$0xff] %vm743, %v734
    %752 = vst.msk [vmem:[%s7 + $0x40] sm:$0xff] %vm743, %v735
    %753 = vst.msk [vmem:[%s7 + $0x48] sm:$0xff] %vm743, %v736
    %754 = vst.msk [vmem:[%s7 + $0x50] sm:$0xff] %vm743, %v737
    %755 = vst.msk [vmem:[%s7 + $0x58] sm:$0xff] %vm743, %v738
    %756 = vst.msk [vmem:[%s7 + $0x60] sm:$0xff] %vm743, %v739
    %757 = vst.msk [vmem:[%s7 + $0x68] sm:$0xff] %vm743, %v740
    %758 = vst.msk [vmem:[%s7 + $0x70] sm:$0xff] %vm743, %v741
    %759 = vst.msk [vmem:[%s7 + $0x78] sm:$0xff] %vm743, %v742
    %v760 = vpack.c.bf16 %v728, %v727
    %v761 = vpack.c.bf16 %v730, %v729
    %v762 = vpack.c.bf16 %v732, %v731
    %v763 = vpack.c.bf16 %v734, %v733
    %v764 = vpack.c.bf16 %v736, %v735
    %v765 = vpack.c.bf16 %v738, %v737
    %v766 = vpack.c.bf16 %v740, %v739
    %v767 = vpack.c.bf16 %v742, %v741
    %v769 = vsel %vm743, %v760, 0
    %v772 = vsel %vm743, %v761, 0
    %v775 = vsel %vm743, %v762, 0
    %v778 = vsel %vm743, %v763, 0
    %v781 = vsel %vm743, %v764, 0
    %v784 = vsel %vm743, %v765, 0
    %v787 = vsel %vm743, %v766, 0
    %v790 = vsel %vm743, %v767, 0
    %792 = vmatprep.subr.bf16.mxu0 0
    %793 = vmatpush1.bf16.xpose.msra.mxu0 %v769
    %794 = vmatprep.subr.bf16.mxu0 0
    %795 = vmatpush1.bf16.xpose.msra.mxu0 %v772
    %796 = vmatprep.subr.bf16.mxu0 0
    %797 = vmatpush1.bf16.xpose.msra.mxu0 %v775
    %798 = vmatprep.subr.bf16.mxu0 0
    %799 = vmatpush1.bf16.xpose.msra.mxu0 %v778
    %800 = vmatprep.subr.bf16.mxu0 0
    %801 = vmatpush1.bf16.xpose.msra.mxu0 %v781
    %802 = vmatprep.subr.bf16.mxu0 0
    %803 = vmatpush1.bf16.xpose.msra.mxu0 %v784
    %804 = vmatprep.subr.bf16.mxu0 0
    %805 = vmatpush1.bf16.xpose.msra.mxu0 %v787
    %806 = vmatprep.subr.bf16.mxu0 0
    %807 = vmatpush1.bf16.xpose.msra.mxu0 %v790
    %808 = vmatprep.subr.bf16.mxu0 0
    %809 = vmatpush1.bf16.xpose.msra.mxu0 0
    %810 = vmatprep.subr.bf16.mxu0 0
    %811 = vmatpush1.bf16.xpose.msra.mxu0 0
    %812 = vmatprep.subr.bf16.mxu0 0
    %813 = vmatpush1.bf16.xpose.msra.mxu0 0
    %814 = vmatprep.subr.bf16.mxu0 0
    %815 = vmatpush1.bf16.xpose.msra.mxu0 0
    %816 = vmatprep.subr.bf16.mxu0 0
    %817 = vmatpush1.bf16.xpose.msra.mxu0 0
    %818 = vmatprep.subr.bf16.mxu0 0
    %819 = vmatpush1.bf16.xpose.msra.mxu0 0
    %820 = vmatprep.subr.bf16.mxu0 0
    %821 = vmatpush1.bf16.xpose.msra.mxu0 0
    %822 = vmatprep.subr.bf16.mxu0 0
    %823 = vmatpush1.bf16.xpose.msra.mxu0 0
    %824 = vmatprep.mubr.bf16.mxu0 0
    %825 = vmatmul.mubr.bf16.gmra.mrb[0].mxu0 %v769
    %v826 = vpop.f32.mrb[0].mxu0
    %v827 = vadd.f32 0.0, %v826
    %v828 = vpop.f32.mrb[0].mxu0
    %v829 = vpop.f32.mrb[0].mxu0
    %v830 = vadd.f32 0.0, %v829
    %v831 = vpop.f32.mrb[0].mxu0
    %832 = vmatprep.mubr.bf16.mxu0 0
    %833 = vmatmul.mubr.bf16.gmra.mrb[0].mxu0 %v772
    %v834 = vpop.f32.mrb[0].mxu0
    %v835 = vadd.f32 0.0, %v834
    %v836 = vpop.f32.mrb[0].mxu0
    %v837 = vpop.f32.mrb[0].mxu0
    %v838 = vadd.f32 0.0, %v837
    %v839 = vpop.f32.mrb[0].mxu0
    %840 = vmatprep.mubr.bf16.mxu0 0
    %841 = vmatmul.mubr.bf16.gmra.mrb[0].mxu0 %v775
    %v842 = vpop.f32.mrb[0].mxu0
    %v843 = vadd.f32 0.0, %v842
    %v844 = vpop.f32.mrb[0].mxu0
    %v845 = vpop.f32.mrb[0].mxu0
    %v846 = vadd.f32 0.0, %v845
    %v847 = vpop.f32.mrb[0].mxu0
    %848 = vmatprep.mubr.bf16.mxu0 0
    %849 = vmatmul.mubr.bf16.gmra.mrb[0].mxu0 %v778
    %v850 = vpop.f32.mrb[0].mxu0
    %v851 = vadd.f32 0.0, %v850
    %v852 = vpop.f32.mrb[0].mxu0
    %v853 = vpop.f32.mrb[0].mxu0
    %v854 = vadd.f32 0.0, %v853
    %v855 = vpop.f32.mrb[0].mxu0
    %856 = vmatprep.mubr.bf16.mxu0 0
    %857 = vmatmul.mubr.bf16.gmra.mrb[0].mxu0 %v781
    %v858 = vpop.f32.mrb[0].mxu0
    %v859 = vadd.f32 0.0, %v858
    %v860 = vpop.f32.mrb[0].mxu0
    %v861 = vpop.f32.mrb[0].mxu0
    %v862 = vadd.f32 0.0, %v861
    %v863 = vpop.f32.mrb[0].mxu0
    %864 = vmatprep.mubr.bf16.mxu0 0
    %865 = vmatmul.mubr.bf16.gmra.mrb[0].mxu0 %v784
    %v866 = vpop.f32.mrb[0].mxu0
    %v867 = vadd.f32 0.0, %v866
    %v868 = vpop.f32.mrb[0].mxu0
    %v869 = vpop.f32.mrb[0].mxu0
    %v870 = vadd.f32 0.0, %v869
    %v871 = vpop.f32.mrb[0].mxu0
    %872 = vmatprep.mubr.bf16.mxu0 0
    %873 = vmatmul.mubr.bf16.gmra.mrb[0].mxu0 %v787
    %v874 = vpop.f32.mrb[0].mxu0
    %v875 = vadd.f32 0.0, %v874
    %v876 = vpop.f32.mrb[0].mxu0
    %v877 = vpop.f32.mrb[0].mxu0
    %v878 = vadd.f32 0.0, %v877
    %v879 = vpop.f32.mrb[0].mxu0
    %880 = vmatprep.mubr.bf16.mxu0 0
    %881 = vmatmul.mubr.bf16.gmra.mrb[0].mxu0 %v790
    %v882 = vpop.f32.mrb[0].mxu0
    %v883 = vadd.f32 0.0, %v882
    %v884 = vpop.f32.mrb[0].mxu0
    %v885 = vpop.f32.mrb[0].mxu0
    %v886 = vadd.f32 0.0, %v885
    %v887 = vpop.f32.mrb[0].mxu0
    %888 = vdwg.mxu0
    %889 = vst [vmem:[#allocation2] sm:$0xff] %v827
    %890 = vst [vmem:[#allocation2 + $0x8] sm:$0xff] %v830
    %891 = vst [vmem:[#allocation2 + $0x10] sm:$0xff] %v835
    %892 = vst [vmem:[#allocation2 + $0x18] sm:$0xff] %v838
    %893 = vst [vmem:[#allocation2 + $0x20] sm:$0xff] %v843
    %894 = vst [vmem:[#allocation2 + $0x28] sm:$0xff] %v846
    %895 = vst [vmem:[#allocation2 + $0x30] sm:$0xff] %v851
    %896 = vst [vmem:[#allocation2 + $0x38] sm:$0xff] %v854
    %897 = vst [vmem:[#allocation2 + $0x40] sm:$0xff] %v859
    %898 = vst [vmem:[#allocation2 + $0x48] sm:$0xff] %v862
    %899 = vst [vmem:[#allocation2 + $0x50] sm:$0xff] %v867
    %900 = vst [vmem:[#allocation2 + $0x58] sm:$0xff] %v870
    %901 = vst [vmem:[#allocation2 + $0x60] sm:$0xff] %v875
    %902 = vst [vmem:[#allocation2 + $0x68] sm:$0xff] %v878
    %903 = vst [vmem:[#allocation2 + $0x70] sm:$0xff] %v883
    %904 = vst [vmem:[#allocation2 + $0x78] sm:$0xff] %v886
    // Predicated region
    $region26: #{tpu_custom_call.1} parent=1 // pred_check
      _
    $region27: #{tpu_custom_call.1} parent=1 // pred_check_branch
      %906 = sbr.rel (0) target = $region29
    $region28: #{tpu_custom_call.1} parent=1 // pred_region
      %s908 = ssub.s32 2048, 2048
      %909 = vsyncadd [#allocation3], %s908
      %s910 = sshll.u32 [#allocation2], 4
      %s911 = int_to_ptr.vmem [resolvable:$true] %s910
      %916 = dma.vmem_to_hbm [thread:$0]  %s911, 2048, %s6, [#allocation3], 128, 128, 8
    $region29: #{tpu_custom_call.1} parent=1 // pred_fallthru
      _
    // Predicated region
    $region30: #{tpu_custom_call.1} parent=1 // pred_check
      _
    $region31: #{tpu_custom_call.1} parent=1 // pred_check_branch
      %918 = sbr.rel (0) target = $region33
    $region32: #{tpu_custom_call.1} parent=1 // pred_region
      _
    $region33: #{tpu_custom_call.1} parent=1 // pred_fallthru
      _
    // Predicated region
    $region34: #{tpu_custom_call.1} parent=1 // pred_check
      _
    $region35: #{tpu_custom_call.1} parent=1 // pred_check_branch
      %920 = sbr.rel (0) target = $region37
    $region36: #{tpu_custom_call.1} parent=1 // pred_region
      %921 = dma.done [#allocation3], 2048
    $region37: #{tpu_custom_call.1} parent=1 // pred_fallthru
      _
    // Predicated region
    $region38: #{tpu_custom_call.1} parent=1 // pred_check
      _
    $region39: #{tpu_custom_call.1} parent=1 // pred_check_branch
      %923 = sbr.rel (0) target = $region41
    $region40: #{tpu_custom_call.1} parent=1 // pred_region
      _
    $region41: #{tpu_custom_call.1} parent=1 // pred_fallthru
      _
    %924 = vsyncpa [#allocation3], 1

</llo_original>
